<compile_context>
chip_gen: v7x
topology: tpu7x:2x2x1
jax: 0.10.0
libtpu: 0.0.40
codegen_flags: <defaults>
</compile_context>

<pallas_src>
import functools

import jax
import jax.numpy as jnp
from jax.experimental import pallas as pl
from jax.experimental.pallas import tpu as pltpu


def _mish(x):
    # mish(x) = x * tanh(softplus(x)).  Rational form: with t = e^x,
    # tanh(log(1+t)) = (t^2 + 2t) / (t^2 + 2t + 2)  -> one exp instead of
    # exp + log1p + tanh.  Matches torch's softplus threshold (x > 20 -> x).
    t = jnp.exp(jnp.minimum(x, 20.0))
    num = t * (t + 2.0)
    return jnp.where(x > 20.0, x, x * (num / (num + 2.0)))


def _ffn_kernel(x_ref, w1_ref, b1_ref, dw_ref, dg_ref, db_ref,
                pw_ref, pg_ref, pb_ref, w2_ref, b2_ref, o_ref,
                *, bb, T, K, matmul_dtype):
    md = matmul_dtype
    f32 = jnp.float32

    x2d = x_ref[...]                                           # [bb*T, Dp]

    # ---- w_1 : Conv1d(d_in -> d_hid1, k=1) on all bb*T rows at once (MXU) ----
    h = jnp.dot(x2d.astype(md), w1_ref[...].astype(md),
                preferred_element_type=f32) + b1_ref[...].astype(f32)
    h = _mish(h)                                               # [bb*T, C1p], dropout == identity

    p = (K - 1) // 2
    T_f = jnp.float32(T)

    # ---- batched weight normalizations (hoisted out of the per-batch loop) ----
    # depthwise: F.normalize(d_w, dim=channel); fold d_g and the T-fold sum
    # introduced by d_w.expand(..., T, ...) into the tap coefficients.
    dw = dw_ref[...].astype(f32)                               # [bb, K, C1p]
    ss = jnp.sum(dw * dw, axis=2, keepdims=True)               # [bb, K, 1]
    dw_eff = dw * jax.lax.rsqrt(jnp.maximum(ss, 1e-24))
    dw_eff = dw_eff * (dg_ref[...].astype(f32) * T_f)          # [bb, K, C1p]

    # pointwise: F.normalize(p_w, dim=channel) over the contraction dim.
    pw = pw_ref[...].astype(f32)                               # [bb, C1p, Op]
    pss = jnp.sum(pw * pw, axis=1, keepdims=True)              # [bb, 1, Op]
    pw_eff = (pw * jax.lax.rsqrt(jnp.maximum(pss, 1e-24))).astype(md)

    # boundary masks per tap offset (computed once, reused for every batch el.)
    tvec = jax.lax.broadcasted_iota(jnp.int32, (T, 1), 0)
    masks = {}
    for k in range(K):
        o = k - p
        if o != 0:
            masks[k] = (tvec + o >= 0) & (tvec + o < T)        # zero-padding at edges

    w2 = w2_ref[...].astype(md)
    b2 = b2_ref[...].astype(f32)

    for j in range(bb):                                        # static unroll over batch block
        hj = h[j * T:(j + 1) * T, :]                           # [T, C1p]

        # depthwise taps via XLU roll + boundary masks (no pad / unaligned slices)
        acc = None
        for k in range(K):
            o = k - p
            if o == 0:
                src = hj
            else:
                rolled = pltpu.roll(hj, shift=(-o) % T, axis=0)
                src = jnp.where(masks[k], rolled, 0.0)
            term = src * dw_eff[j, k:k + 1, :]
            acc = term if acc is None else acc + term
        depth = acc + db_ref[j].astype(f32)                    # [T, C1p]

        # pointwise: p_g folded into the activation (lane-aligned scale)
        act = depth * pg_ref[j].astype(f32)                    # [T, C1p]
        x2 = jnp.dot(act.astype(md), pw_eff[j],
                     preferred_element_type=f32) + pb_ref[j].astype(f32)   # [T, Op]

        # ---- w_2 : Conv1d(d_hid2 -> d_in, k=1) + residual ----
        xj = x2d[j * T:(j + 1) * T, :].astype(f32)
        y = jnp.dot(x2.astype(md), w2, preferred_element_type=f32) + b2 + xj
        o_ref[j * T:(j + 1) * T, :] = y.astype(o_ref.dtype)


def _round_up(n, m):
    return ((n + m - 1) // m) * m


def _choose_bb_and_vmem(B, T, Dp, C1p, Op, K, w_bytes):
    """Pick the batch block size bb (divisor of B) from a per-step VMEM budget."""
    a_bytes = 4
    per_b_stream = (2 * T * Dp * a_bytes                       # x block + out block
                    + (K * C1p + 3 * C1p + 2 * Op) * a_bytes   # d_w, d_g, d_b, p_g, p_b
                    + C1p * Op * w_bytes)                      # p_w
    shared = (Dp * C1p + Op * Dp) * w_bytes + (C1p + Dp) * a_bytes
    per_b_live = T * (2 * C1p + Op + Dp) * a_bytes             # h, depth/act, x2, y (rough)

    def est(bb):
        return 2 * bb * per_b_stream + 2 * shared + bb * per_b_live

    budget = 40 * 1024 * 1024                                  # keeps double-buffering on v7x (64 MiB)
    valid = [bb for bb in range(1, B + 1)
             if B % bb == 0 and (bb == B or (bb * T) % 8 == 0)]
    fitting = [bb for bb in valid if est(bb) <= budget] or [min(valid)]

    target_rows = 512                                          # amortize ~0.35us/step + decent MXU M
    reaching = [bb for bb in fitting if bb * T >= target_rows]
    bb = min(reaching) if reaching else max(fitting)

    vmem_limit = int(min(max(est(bb) + (8 << 20), 32 << 20), 96 << 20))
    return bb, vmem_limit


@functools.partial(jax.jit, static_argnames=("matmul_dtype",))
def sc_positionwise_ff_low(x, w1, b1, w2, b2, d_w, d_g, d_b, p_w, p_g, p_b,
                           matmul_dtype=jnp.float32):
    """
    x   : [B, T, d_in]
    w1  : [d_hid1, d_in, 1]   b1 : [d_hid1]      (ConvNorm w_1)
    w2  : [d_in, d_hid2, 1]   b2 : [d_in]        (ConvNorm w_2)
    d_w : [B, d_hid1, 1, K]   d_g, d_b : [B, d_hid1]
    p_w : [B, d_hid1, d_hid2, 1]  p_g : [B, d_hid1]  p_b : [B, d_hid2]
    returns [B, T, d_in]
    """
    B, T, Din = x.shape
    C1 = w1.shape[0]
    O = p_w.shape[2]
    K = d_w.shape[-1]

    LANE = 128
    Dp, C1p, Op = _round_up(Din, LANE), _round_up(C1, LANE), _round_up(O, LANE)

    f32 = jnp.float32
    md = matmul_dtype

    # ---- parameter plumbing (glue): channel-last, lane-padded layouts ----
    def pad2(a, r, c):
        return jnp.pad(a, ((0, r - a.shape[0]), (0, c - a.shape[1])))

    def pad3(a, d0, d1, d2):
        return jnp.pad(a, ((0, d0 - a.shape[0]), (0, d1 - a.shape[1]), (0, d2 - a.shape[2])))

    x_p = jnp.pad(x.astype(f32), ((0, 0), (0, 0), (0, Dp - Din)))
    x_flat = x_p.reshape(B * T, Dp)

    w1_t = pad2(jnp.transpose(w1[:, :, 0], (1, 0)).astype(md), Dp, C1p)      # [Dp, C1p]
    b1_r = pad2(b1.reshape(1, C1).astype(f32), 1, C1p)
    w2_t = pad2(jnp.transpose(w2[:, :, 0], (1, 0)).astype(md), Op, Dp)       # [Op, Dp]
    b2_r = pad2(b2.reshape(1, Din).astype(f32), 1, Dp)

    dw_t = pad3(jnp.transpose(d_w[:, :, 0, :], (0, 2, 1)).astype(f32), B, K, C1p)  # [B, K, C1p]
    dg_r = pad3(d_g.reshape(B, 1, C1).astype(f32), B, 1, C1p)
    db_r = pad3(d_b.reshape(B, 1, C1).astype(f32), B, 1, C1p)
    pw_r = pad3(p_w[:, :, :, 0].astype(md), B, C1p, Op)                      # [B, C1p, Op]
    pg_r = pad3(p_g.reshape(B, 1, C1).astype(f32), B, 1, C1p)
    pb_r = pad3(p_b.reshape(B, 1, O).astype(f32), B, 1, Op)

    w_bytes = jnp.dtype(md).itemsize
    bb, vmem_limit = _choose_bb_and_vmem(B, T, Dp, C1p, Op, K, w_bytes)

    row_map = lambda i: (i, 0)
    bat_map = lambda i: (i, 0, 0)
    shared2 = lambda i: (0, 0)

    kernel = functools.partial(_ffn_kernel, bb=bb, T=T, K=K, matmul_dtype=md)

    out_flat = pl.pallas_call(
        kernel,
        out_shape=jax.ShapeDtypeStruct((B * T, Dp), x.dtype),
        grid=(B // bb,),
        in_specs=[
            pl.BlockSpec((bb * T, Dp), row_map),      # x (flattened rows)
            pl.BlockSpec((Dp, C1p), shared2),         # w1
            pl.BlockSpec((1, C1p), shared2),          # b1
            pl.BlockSpec((bb, K, C1p), bat_map),      # d_w
            pl.BlockSpec((bb, 1, C1p), bat_map),      # d_g
            pl.BlockSpec((bb, 1, C1p), bat_map),      # d_b
            pl.BlockSpec((bb, C1p, Op), bat_map),     # p_w
            pl.BlockSpec((bb, 1, C1p), bat_map),      # p_g
            pl.BlockSpec((bb, 1, Op), bat_map),       # p_b
            pl.BlockSpec((Op, Dp), shared2),          # w2
            pl.BlockSpec((1, Dp), shared2),           # b2
        ],
        out_specs=pl.BlockSpec((bb * T, Dp), row_map),
        compiler_params=pltpu.CompilerParams(
            dimension_semantics=("parallel",),
            vmem_limit_bytes=vmem_limit),
    )(x_flat, w1_t, b1_r, dw_t, dg_r, db_r, pw_r, pg_r, pb_r, w2_t, b2_r)

    return out_flat.reshape(B, T, Dp)[:, :, :Din]


def _reference(x, w1, b1, w2, b2, d_w, d_g, d_b, p_w, p_g, p_b):
    """Pure-JAX transcription of the PyTorch forward (eval mode)."""
    B, T, Din = x.shape
    residual = x
    h = jnp.einsum('bti,ci->btc', x, w1[:, :, 0]) + b1           # w_1
    h = h * jnp.tanh(jnp.logaddexp(h, 0.0))                      # Mish
    hc = jnp.transpose(h, (0, 2, 1))                             # [B,C1,T]
    K = d_w.shape[-1]
    p = (K - 1) // 2
    hpad = jnp.pad(hc, ((0, 0), (0, 0), (p, p)))
    x_unf = jnp.stack([hpad[:, :, k:k + T] for k in range(K)], axis=-1)   # [B,C1,T,K]
    dwn = d_w / jnp.maximum(jnp.linalg.norm(d_w, axis=1, keepdims=True), 1e-12)
    dwn = dwn * d_g[:, :, None, None]
    dwe = jnp.broadcast_to(dwn, (B, d_w.shape[1], T, K))
    xx = jnp.einsum('bctk,bcwk->bct', x_unf, dwe) + d_b[:, :, None]
    pwn = p_w / jnp.maximum(jnp.linalg.norm(p_w, axis=1, keepdims=True), 1e-12)
    pwn = pwn * p_g[:, :, None, None]
    xx = jnp.einsum('bct,bco->bot', xx, pwn[:, :, :, 0]) + p_b[:, :, None]
    out2 = jnp.einsum('bot,io->bit', xx, w2[:, :, 0]) + b2[None, :, None]
    return jnp.transpose(out2, (0, 2, 1)) + residual


if __name__ == "__main__":
    B, T = 2, 16
    d_in, d_hid1, d_hid2 = 8, 16, 16
    K = 3

    key = jax.random.PRNGKey(0)
    ks = jax.random.split(key, 12)
    x = jax.random.normal(ks[0], (B, T, d_in), jnp.float32)
    w1 = jax.random.normal(ks[1], (d_hid1, d_in, 1), jnp.float32) * 0.2
    b1 = jax.random.normal(ks[2], (d_hid1,), jnp.float32) * 0.1
    w2 = jax.random.normal(ks[3], (d_in, d_hid2, 1), jnp.float32) * 0.2
    b2 = jax.random.normal(ks[4], (d_in,), jnp.float32) * 0.1
    d_w = jax.random.normal(ks[5], (B, d_hid1, 1, K), jnp.float32)
    d_g = jax.random.normal(ks[6], (B, d_hid1), jnp.float32)
    d_b = jax.random.normal(ks[7], (B, d_hid1), jnp.float32) * 0.1
    p_w = jax.random.normal(ks[8], (B, d_hid1, d_hid2, 1), jnp.float32)
    p_g = jax.random.normal(ks[9], (B, d_hid1), jnp.float32)
    p_b = jax.random.normal(ks[10], (B, d_hid2), jnp.float32) * 0.1

    out = sc_positionwise_ff_low(x, w1, b1, w2, b2, d_w, d_g, d_b, p_w, p_g, p_b)
    out = jax.block_until_ready(out)

    ref = _reference(x, w1, b1, w2, b2, d_w, d_g, d_b, p_w, p_g, p_b)
    assert out.shape == (B, T, d_in)
    err = float(jnp.max(jnp.abs(out - ref)))
    assert jnp.allclose(out, ref, rtol=1e-4, atol=1e-3), err

    # bf16 MXU path (recommended on v6e/v7x): halves weight/p_w DMA, f32 accumulation.
    out_bf16 = sc_positionwise_ff_low(x, w1, b1, w2, b2, d_w, d_g, d_b, p_w, p_g, p_b,
                                      matmul_dtype=jnp.bfloat16)
    out_bf16 = jax.block_until_ready(out_bf16)
    err_bf16 = float(jnp.max(jnp.abs(out_bf16 - ref)))
    assert jnp.allclose(out_bf16, ref, rtol=0.1, atol=1.0), err_bf16

    print("KERNEL_OK")
</pallas_src>

<mosaic_0001>
module attributes {stable_mosaic.version = 11 : i64} {
  func.func @_ffn_kernel(%arg0: i32, %arg1: memref<32x128xf32, #tpu.memory_space<vmem>>, %arg2: memref<128x128xf32, #tpu.memory_space<vmem>>, %arg3: memref<1x128xf32, #tpu.memory_space<vmem>>, %arg4: memref<2x3x128xf32, #tpu.memory_space<vmem>>, %arg5: memref<2x1x128xf32, #tpu.memory_space<vmem>>, %arg6: memref<2x1x128xf32, #tpu.memory_space<vmem>>, %arg7: memref<2x128x128xf32, #tpu.memory_space<vmem>>, %arg8: memref<2x1x128xf32, #tpu.memory_space<vmem>>, %arg9: memref<2x1x128xf32, #tpu.memory_space<vmem>>, %arg10: memref<128x128xf32, #tpu.memory_space<vmem>>, %arg11: memref<1x128xf32, #tpu.memory_space<vmem>>, %arg12: memref<32x128xf32, #tpu.memory_space<vmem>>) attributes {dimension_semantics = [#tpu.dimension_semantics<parallel>], iteration_bounds = array<i64: 1>, scalar_prefetch = 0 : i64, scratch_operands = 0 : i64, tpu.core_type = #tpu.core_type<tc>, window_params = [{transform_indices = @transform_0, window_bounds = array<i64: 32, 128>}, {pipeline_mode = #tpu.pipeline_mode<synchronous>, transform_indices = @transform_1, window_bounds = array<i64: 128, 128>}, {pipeline_mode = #tpu.pipeline_mode<synchronous>, transform_indices = @transform_2, window_bounds = array<i64: 1, 128>}, {transform_indices = @transform_3, window_bounds = array<i64: 2, 3, 128>}, {transform_indices = @transform_4, window_bounds = array<i64: 2, 1, 128>}, {transform_indices = @transform_5, window_bounds = array<i64: 2, 1, 128>}, {transform_indices = @transform_6, window_bounds = array<i64: 2, 128, 128>}, {transform_indices = @transform_7, window_bounds = array<i64: 2, 1, 128>}, {transform_indices = @transform_8, window_bounds = array<i64: 2, 1, 128>}, {pipeline_mode = #tpu.pipeline_mode<synchronous>, transform_indices = @transform_9, window_bounds = array<i64: 128, 128>}, {pipeline_mode = #tpu.pipeline_mode<synchronous>, transform_indices = @transform_10, window_bounds = array<i64: 1, 128>}, {transform_indices = @transform_11, window_bounds = array<i64: 32, 128>}]} {
    %c0 = arith.constant 0 : index
    %c0_0 = arith.constant 0 : index
    %0 = vector.load %arg1[%c0, %c0_0] : memref<32x128xf32, #tpu.memory_space<vmem>>, vector<32x128xf32>
    %c0_1 = arith.constant 0 : index
    %c0_2 = arith.constant 0 : index
    %1 = vector.load %arg2[%c0_1, %c0_2] : memref<128x128xf32, #tpu.memory_space<vmem>>, vector<128x128xf32>
    %cst = arith.constant dense<0.000000e+00> : vector<32x128xf32>
    %2 = tpu.matmul %0, %1, %cst {dimension_numbers = #tpu.dot_dimension_numbers<[1], [0], [0], [1], [0, 0, 1, 1], [], []>} : vector<32x128xf32>, vector<128x128xf32>, vector<32x128xf32> -> vector<32x128xf32>
    %c0_3 = arith.constant 0 : index
    %c0_4 = arith.constant 0 : index
    %3 = vector.load %arg3[%c0_3, %c0_4] : memref<1x128xf32, #tpu.memory_space<vmem>>, vector<1x128xf32>
    %4 = vector.broadcast %3 : vector<1x128xf32> to vector<32x128xf32>
    %5 = arith.addf %2, %4 : vector<32x128xf32>
    %cst_5 = arith.constant 2.000000e+01 : f32
    %6 = vector.broadcast %cst_5 : f32 to vector<32x128xf32>
    %7 = arith.minimumf %5, %6 : vector<32x128xf32>
    %8 = math.exp %7 : vector<32x128xf32>
    %cst_6 = arith.constant 2.000000e+00 : f32
    %9 = vector.broadcast %cst_6 : f32 to vector<32x128xf32>
    %10 = arith.addf %8, %9 : vector<32x128xf32>
    %11 = arith.mulf %8, %10 : vector<32x128xf32>
    %cst_7 = arith.constant 2.000000e+01 : f32
    %12 = vector.broadcast %cst_7 : f32 to vector<32x128xf32>
    %13 = arith.cmpf ogt, %5, %12 : vector<32x128xf32>
    %cst_8 = arith.constant 2.000000e+00 : f32
    %14 = vector.broadcast %cst_8 : f32 to vector<32x128xf32>
    %15 = arith.addf %11, %14 : vector<32x128xf32>
    %16 = arith.divf %11, %15 : vector<32x128xf32>
    %17 = arith.mulf %5, %16 : vector<32x128xf32>
    %18 = arith.select %13, %5, %17 : vector<32x128xi1>, vector<32x128xf32>
    %c0_9 = arith.constant 0 : index
    %c0_10 = arith.constant 0 : index
    %c0_11 = arith.constant 0 : index
    %19 = vector.load %arg4[%c0_9, %c0_10, %c0_11] : memref<2x3x128xf32, #tpu.memory_space<vmem>>, vector<2x3x128xf32>
    %20 = arith.mulf %19, %19 : vector<2x3x128xf32>
    %cst_12 = arith.constant dense<0.000000e+00> : vector<2x3xf32>
    %21 = vector.multi_reduction <add>, %20, %cst_12 [2] : vector<2x3x128xf32> to vector<2x3xf32>
    %22 = vector.shape_cast %21 : vector<2x3xf32> to vector<2x3x1xf32>
    %cst_13 = arith.constant 1.000000e-24 : f32
    %23 = vector.broadcast %cst_13 : f32 to vector<2x3x1xf32>
    %24 = arith.maximumf %22, %23 : vector<2x3x1xf32>
    %25 = math.rsqrt %24 : vector<2x3x1xf32>
    %26 = vector.broadcast %25 : vector<2x3x1xf32> to vector<2x3x128xf32>
    %27 = arith.mulf %19, %26 : vector<2x3x128xf32>
    %c0_14 = arith.constant 0 : index
    %c0_15 = arith.constant 0 : index
    %c0_16 = arith.constant 0 : index
    %28 = vector.load %arg5[%c0_14, %c0_15, %c0_16] : memref<2x1x128xf32, #tpu.memory_space<vmem>>, vector<2x1x128xf32>
    %cst_17 = arith.constant 1.600000e+01 : f32
    %29 = vector.broadcast %cst_17 : f32 to vector<2x1x128xf32>
    %30 = arith.mulf %28, %29 : vector<2x1x128xf32>
    %31 = vector.broadcast %30 : vector<2x1x128xf32> to vector<2x3x128xf32>
    %32 = arith.mulf %27, %31 : vector<2x3x128xf32>
    %c0_18 = arith.constant 0 : index
    %c0_19 = arith.constant 0 : index
    %c0_20 = arith.constant 0 : index
    %33 = vector.load %arg7[%c0_18, %c0_19, %c0_20] : memref<2x128x128xf32, #tpu.memory_space<vmem>>, vector<2x128x128xf32>
    %34 = arith.mulf %33, %33 : vector<2x128x128xf32>
    %cst_21 = arith.constant dense<0.000000e+00> : vector<2x128xf32>
    %35 = vector.multi_reduction <add>, %34, %cst_21 [1] : vector<2x128x128xf32> to vector<2x128xf32>
    %36 = vector.shape_cast %35 : vector<2x128xf32> to vector<2x1x128xf32>
    %cst_22 = arith.constant 1.000000e-24 : f32
    %37 = vector.broadcast %cst_22 : f32 to vector<2x1x128xf32>
    %38 = arith.maximumf %36, %37 : vector<2x1x128xf32>
    %39 = math.rsqrt %38 : vector<2x1x128xf32>
    %40 = vector.broadcast %39 : vector<2x1x128xf32> to vector<2x128x128xf32>
    %41 = arith.mulf %33, %40 : vector<2x128x128xf32>
    %42 = tpu.iota {dimensions = array<i32: 0>} : vector<16x1xi32>
    %c-1_i32 = arith.constant -1 : i32
    %43 = vector.broadcast %c-1_i32 : i32 to vector<16x1xi32>
    %44 = arith.addi %42, %43 : vector<16x1xi32>
    %c0_i32 = arith.constant 0 : i32
    %45 = vector.broadcast %c0_i32 : i32 to vector<16x1xi32>
    %46 = arith.cmpi sge, %44, %45 : vector<16x1xi32>
    %c-1_i32_23 = arith.constant -1 : i32
    %47 = vector.broadcast %c-1_i32_23 : i32 to vector<16x1xi32>
    %48 = arith.addi %42, %47 : vector<16x1xi32>
    %c16_i32 = arith.constant 16 : i32
    %49 = vector.broadcast %c16_i32 : i32 to vector<16x1xi32>
    %50 = arith.cmpi slt, %48, %49 : vector<16x1xi32>
    %51 = arith.andi %46, %50 : vector<16x1xi1>
    %c1_i32 = arith.constant 1 : i32
    %52 = vector.broadcast %c1_i32 : i32 to vector<16x1xi32>
    %53 = arith.addi %42, %52 : vector<16x1xi32>
    %c0_i32_24 = arith.constant 0 : i32
    %54 = vector.broadcast %c0_i32_24 : i32 to vector<16x1xi32>
    %55 = arith.cmpi sge, %53, %54 : vector<16x1xi32>
    %c1_i32_25 = arith.constant 1 : i32
    %56 = vector.broadcast %c1_i32_25 : i32 to vector<16x1xi32>
    %57 = arith.addi %42, %56 : vector<16x1xi32>
    %c16_i32_26 = arith.constant 16 : i32
    %58 = vector.broadcast %c16_i32_26 : i32 to vector<16x1xi32>
    %59 = arith.cmpi slt, %57, %58 : vector<16x1xi32>
    %60 = arith.andi %55, %59 : vector<16x1xi1>
    %c0_27 = arith.constant 0 : index
    %c0_28 = arith.constant 0 : index
    %61 = vector.load %arg10[%c0_27, %c0_28] : memref<128x128xf32, #tpu.memory_space<vmem>>, vector<128x128xf32>
    %c0_29 = arith.constant 0 : index
    %c0_30 = arith.constant 0 : index
    %62 = vector.load %arg11[%c0_29, %c0_30] : memref<1x128xf32, #tpu.memory_space<vmem>>, vector<1x128xf32>
    %63 = vector.extract_strided_slice %18 {offsets = [0, 0], sizes = [16, 128], strides = [1, 1]} : vector<32x128xf32> to vector<16x128xf32>
    %c1_i32_31 = arith.constant 1 : i32
    %64 = tpu.dynamic_rotate %63 by %c1_i32_31 dim 0 : vector<16x128xf32>, i32 -> vector<16x128xf32>
    %cst_32 = arith.constant 0.000000e+00 : f32
    %65 = vector.shape_cast %51 : vector<16x1xi1> to vector<16x1xi1>
    %66 = vector.broadcast %65 : vector<16x1xi1> to vector<16x128xi1>
    %67 = vector.broadcast %cst_32 : f32 to vector<16x128xf32>
    %68 = arith.select %66, %64, %67 : vector<16x128xi1>, vector<16x128xf32>
    %69 = vector.extract_strided_slice %32 {offsets = [0, 0, 0], sizes = [1, 1, 128], strides = [1, 1, 1]} : vector<2x3x128xf32> to vector<1x1x128xf32>
    %70 = vector.shape_cast %69 : vector<1x1x128xf32> to vector<1x128xf32>
    %71 = vector.broadcast %70 : vector<1x128xf32> to vector<16x128xf32>
    %72 = arith.mulf %68, %71 : vector<16x128xf32>
    %73 = vector.extract_strided_slice %32 {offsets = [0, 1, 0], sizes = [1, 1, 128], strides = [1, 1, 1]} : vector<2x3x128xf32> to vector<1x1x128xf32>
    %74 = vector.shape_cast %73 : vector<1x1x128xf32> to vector<1x128xf32>
    %75 = vector.broadcast %74 : vector<1x128xf32> to vector<16x128xf32>
    %76 = arith.mulf %63, %75 : vector<16x128xf32>
    %77 = arith.addf %72, %76 : vector<16x128xf32>
    %c15_i32 = arith.constant 15 : i32
    %78 = tpu.dynamic_rotate %63 by %c15_i32 dim 0 : vector<16x128xf32>, i32 -> vector<16x128xf32>
    %cst_33 = arith.constant 0.000000e+00 : f32
    %79 = vector.shape_cast %60 : vector<16x1xi1> to vector<16x1xi1>
    %80 = vector.broadcast %79 : vector<16x1xi1> to vector<16x128xi1>
    %81 = vector.broadcast %cst_33 : f32 to vector<16x128xf32>
    %82 = arith.select %80, %78, %81 : vector<16x128xi1>, vector<16x128xf32>
    %83 = vector.extract_strided_slice %32 {offsets = [0, 2, 0], sizes = [1, 1, 128], strides = [1, 1, 1]} : vector<2x3x128xf32> to vector<1x1x128xf32>
    %84 = vector.shape_cast %83 : vector<1x1x128xf32> to vector<1x128xf32>
    %85 = vector.broadcast %84 : vector<1x128xf32> to vector<16x128xf32>
    %86 = arith.mulf %82, %85 : vector<16x128xf32>
    %87 = arith.addf %77, %86 : vector<16x128xf32>
    %c0_34 = arith.constant 0 : index
    %c0_35 = arith.constant 0 : index
    %c0_36 = arith.constant 0 : index
    %88 = vector.load %arg6[%c0_34, %c0_35, %c0_36] : memref<2x1x128xf32, #tpu.memory_space<vmem>>, vector<1x1x128xf32>
    %89 = vector.shape_cast %88 : vector<1x1x128xf32> to vector<1x128xf32>
    %90 = vector.broadcast %89 : vector<1x128xf32> to vector<16x128xf32>
    %91 = arith.addf %87, %90 : vector<16x128xf32>
    %c0_37 = arith.constant 0 : index
    %c0_38 = arith.constant 0 : index
    %c0_39 = arith.constant 0 : index
    %92 = vector.load %arg8[%c0_37, %c0_38, %c0_39] : memref<2x1x128xf32, #tpu.memory_space<vmem>>, vector<1x1x128xf32>
    %93 = vector.shape_cast %92 : vector<1x1x128xf32> to vector<1x128xf32>
    %94 = vector.broadcast %93 : vector<1x128xf32> to vector<16x128xf32>
    %95 = arith.mulf %91, %94 : vector<16x128xf32>
    %96 = vector.extract_strided_slice %41 {offsets = [0, 0, 0], sizes = [1, 128, 128], strides = [1, 1, 1]} : vector<2x128x128xf32> to vector<1x128x128xf32>
    %97 = vector.shape_cast %96 : vector<1x128x128xf32> to vector<128x128xf32>
    %cst_40 = arith.constant dense<0.000000e+00> : vector<16x128xf32>
    %98 = tpu.matmul %95, %97, %cst_40 {dimension_numbers = #tpu.dot_dimension_numbers<[1], [0], [0], [1], [0, 0, 1, 1], [], []>} : vector<16x128xf32>, vector<128x128xf32>, vector<16x128xf32> -> vector<16x128xf32>
    %c0_41 = arith.constant 0 : index
    %c0_42 = arith.constant 0 : index
    %c0_43 = arith.constant 0 : index
    %99 = vector.load %arg9[%c0_41, %c0_42, %c0_43] : memref<2x1x128xf32, #tpu.memory_space<vmem>>, vector<1x1x128xf32>
    %100 = vector.shape_cast %99 : vector<1x1x128xf32> to vector<1x128xf32>
    %101 = vector.broadcast %100 : vector<1x128xf32> to vector<16x128xf32>
    %102 = arith.addf %98, %101 : vector<16x128xf32>
    %103 = vector.extract_strided_slice %0 {offsets = [0, 0], sizes = [16, 128], strides = [1, 1]} : vector<32x128xf32> to vector<16x128xf32>
    %cst_44 = arith.constant dense<0.000000e+00> : vector<16x128xf32>
    %104 = tpu.matmul %102, %61, %cst_44 {dimension_numbers = #tpu.dot_dimension_numbers<[1], [0], [0], [1], [0, 0, 1, 1], [], []>} : vector<16x128xf32>, vector<128x128xf32>, vector<16x128xf32> -> vector<16x128xf32>
    %105 = vector.broadcast %62 : vector<1x128xf32> to vector<16x128xf32>
    %106 = arith.addf %104, %105 : vector<16x128xf32>
    %107 = arith.addf %106, %103 : vector<16x128xf32>
    %c0_45 = arith.constant 0 : index
    %c0_46 = arith.constant 0 : index
    %108 = vector.load %arg12[%c0_45, %c0_46] : memref<32x128xf32, #tpu.memory_space<vmem>>, vector<16x128xf32>
    tpu.vector_store %arg12[%c0_45, %c0_46], %107 {strides = array<i32>} : memref<32x128xf32, #tpu.memory_space<vmem>>, vector<16x128xf32>,
    %109 = vector.extract_strided_slice %18 {offsets = [16, 0], sizes = [16, 128], strides = [1, 1]} : vector<32x128xf32> to vector<16x128xf32>
    %c1_i32_47 = arith.constant 1 : i32
    %110 = tpu.dynamic_rotate %109 by %c1_i32_47 dim 0 : vector<16x128xf32>, i32 -> vector<16x128xf32>
    %cst_48 = arith.constant 0.000000e+00 : f32
    %111 = vector.shape_cast %51 : vector<16x1xi1> to vector<16x1xi1>
    %112 = vector.broadcast %111 : vector<16x1xi1> to vector<16x128xi1>
    %113 = vector.broadcast %cst_48 : f32 to vector<16x128xf32>
    %114 = arith.select %112, %110, %113 : vector<16x128xi1>, vector<16x128xf32>
    %115 = vector.extract_strided_slice %32 {offsets = [1, 0, 0], sizes = [1, 1, 128], strides = [1, 1, 1]} : vector<2x3x128xf32> to vector<1x1x128xf32>
    %116 = vector.shape_cast %115 : vector<1x1x128xf32> to vector<1x128xf32>
    %117 = vector.broadcast %116 : vector<1x128xf32> to vector<16x128xf32>
    %118 = arith.mulf %114, %117 : vector<16x128xf32>
    %119 = vector.extract_strided_slice %32 {offsets = [1, 1, 0], sizes = [1, 1, 128], strides = [1, 1, 1]} : vector<2x3x128xf32> to vector<1x1x128xf32>
    %120 = vector.shape_cast %119 : vector<1x1x128xf32> to vector<1x128xf32>
    %121 = vector.broadcast %120 : vector<1x128xf32> to vector<16x128xf32>
    %122 = arith.mulf %109, %121 : vector<16x128xf32>
    %123 = arith.addf %118, %122 : vector<16x128xf32>
    %c15_i32_49 = arith.constant 15 : i32
    %124 = tpu.dynamic_rotate %109 by %c15_i32_49 dim 0 : vector<16x128xf32>, i32 -> vector<16x128xf32>
    %cst_50 = arith.constant 0.000000e+00 : f32
    %125 = vector.shape_cast %60 : vector<16x1xi1> to vector<16x1xi1>
    %126 = vector.broadcast %125 : vector<16x1xi1> to vector<16x128xi1>
    %127 = vector.broadcast %cst_50 : f32 to vector<16x128xf32>
    %128 = arith.select %126, %124, %127 : vector<16x128xi1>, vector<16x128xf32>
    %129 = vector.extract_strided_slice %32 {offsets = [1, 2, 0], sizes = [1, 1, 128], strides = [1, 1, 1]} : vector<2x3x128xf32> to vector<1x1x128xf32>
    %130 = vector.shape_cast %129 : vector<1x1x128xf32> to vector<1x128xf32>
    %131 = vector.broadcast %130 : vector<1x128xf32> to vector<16x128xf32>
    %132 = arith.mulf %128, %131 : vector<16x128xf32>
    %133 = arith.addf %123, %132 : vector<16x128xf32>
    %c1 = arith.constant 1 : index
    %c0_51 = arith.constant 0 : index
    %c0_52 = arith.constant 0 : index
    %134 = vector.load %arg6[%c1, %c0_51, %c0_52] : memref<2x1x128xf32, #tpu.memory_space<vmem>>, vector<1x1x128xf32>
    %135 = vector.shape_cast %134 : vector<1x1x128xf32> to vector<1x128xf32>
    %136 = vector.broadcast %135 : vector<1x128xf32> to vector<16x128xf32>
    %137 = arith.addf %133, %136 : vector<16x128xf32>
    %c1_53 = arith.constant 1 : index
    %c0_54 = arith.constant 0 : index
    %c0_55 = arith.constant 0 : index
    %138 = vector.load %arg8[%c1_53, %c0_54, %c0_55] : memref<2x1x128xf32, #tpu.memory_space<vmem>>, vector<1x1x128xf32>
    %139 = vector.shape_cast %138 : vector<1x1x128xf32> to vector<1x128xf32>
    %140 = vector.broadcast %139 : vector<1x128xf32> to vector<16x128xf32>
    %141 = arith.mulf %137, %140 : vector<16x128xf32>
    %142 = vector.extract_strided_slice %41 {offsets = [1, 0, 0], sizes = [1, 128, 128], strides = [1, 1, 1]} : vector<2x128x128xf32> to vector<1x128x128xf32>
    %143 = vector.shape_cast %142 : vector<1x128x128xf32> to vector<128x128xf32>
    %cst_56 = arith.constant dense<0.000000e+00> : vector<16x128xf32>
    %144 = tpu.matmul %141, %143, %cst_56 {dimension_numbers = #tpu.dot_dimension_numbers<[1], [0], [0], [1], [0, 0, 1, 1], [], []>} : vector<16x128xf32>, vector<128x128xf32>, vector<16x128xf32> -> vector<16x128xf32>
    %c1_57 = arith.constant 1 : index
    %c0_58 = arith.constant 0 : index
    %c0_59 = arith.constant 0 : index
    %145 = vector.load %arg9[%c1_57, %c0_58, %c0_59] : memref<2x1x128xf32, #tpu.memory_space<vmem>>, vector<1x1x128xf32>
    %146 = vector.shape_cast %145 : vector<1x1x128xf32> to vector<1x128xf32>
    %147 = vector.broadcast %146 : vector<1x128xf32> to vector<16x128xf32>
    %148 = arith.addf %144, %147 : vector<16x128xf32>
    %149 = vector.extract_strided_slice %0 {offsets = [16, 0], sizes = [16, 128], strides = [1, 1]} : vector<32x128xf32> to vector<16x128xf32>
    %cst_60 = arith.constant dense<0.000000e+00> : vector<16x128xf32>
    %150 = tpu.matmul %148, %61, %cst_60 {dimension_numbers = #tpu.dot_dimension_numbers<[1], [0], [0], [1], [0, 0, 1, 1], [], []>} : vector<16x128xf32>, vector<128x128xf32>, vector<16x128xf32> -> vector<16x128xf32>
    %151 = vector.broadcast %62 : vector<1x128xf32> to vector<16x128xf32>
    %152 = arith.addf %150, %151 : vector<16x128xf32>
    %153 = arith.addf %152, %149 : vector<16x128xf32>
    %c16 = arith.constant 16 : index
    %c0_61 = arith.constant 0 : index
    %154 = vector.load %arg12[%c16, %c0_61] : memref<32x128xf32, #tpu.memory_space<vmem>>, vector<16x128xf32>
    tpu.vector_store %arg12[%c16, %c0_61], %153 {strides = array<i32>} : memref<32x128xf32, #tpu.memory_space<vmem>>, vector<16x128xf32>,
    return
  }
  func.func @transform_0(%arg0: i32) -> (i32, i32) {
    %c0_i32 = arith.constant 0 : i32
    %c0_i32_0 = arith.constant 0 : i32
    return %arg0, %c0_i32 : i32, i32
  }
  func.func @transform_1(%arg0: i32) -> (i32, i32) {
    %c0_i32 = arith.constant 0 : i32
    %c0_i32_0 = arith.constant 0 : i32
    %c0_i32_1 = arith.constant 0 : i32
    return %c0_i32, %c0_i32_0 : i32, i32
  }
  func.func @transform_2(%arg0: i32) -> (i32, i32) {
    %c0_i32 = arith.constant 0 : i32
    %c0_i32_0 = arith.constant 0 : i32
    %c0_i32_1 = arith.constant 0 : i32
    return %c0_i32, %c0_i32_0 : i32, i32
  }
  func.func @transform_3(%arg0: i32) -> (i32, i32, i32) {
    %c0_i32 = arith.constant 0 : i32
    %c0_i32_0 = arith.constant 0 : i32
    %c0_i32_1 = arith.constant 0 : i32
    return %arg0, %c0_i32, %c0_i32_0 : i32, i32, i32
  }
  func.func @transform_4(%arg0: i32) -> (i32, i32, i32) {
    %c0_i32 = arith.constant 0 : i32
    %c0_i32_0 = arith.constant 0 : i32
    %c0_i32_1 = arith.constant 0 : i32
    return %arg0, %c0_i32, %c0_i32_0 : i32, i32, i32
  }
  func.func @transform_5(%arg0: i32) -> (i32, i32, i32) {
    %c0_i32 = arith.constant 0 : i32
    %c0_i32_0 = arith.constant 0 : i32
    %c0_i32_1 = arith.constant 0 : i32
    return %arg0, %c0_i32, %c0_i32_0 : i32, i32, i32
  }
  func.func @transform_6(%arg0: i32) -> (i32, i32, i32) {
    %c0_i32 = arith.constant 0 : i32
    %c0_i32_0 = arith.constant 0 : i32
    %c0_i32_1 = arith.constant 0 : i32
    return %arg0, %c0_i32, %c0_i32_0 : i32, i32, i32
  }
  func.func @transform_7(%arg0: i32) -> (i32, i32, i32) {
    %c0_i32 = arith.constant 0 : i32
    %c0_i32_0 = arith.constant 0 : i32
    %c0_i32_1 = arith.constant 0 : i32
    return %arg0, %c0_i32, %c0_i32_0 : i32, i32, i32
  }
  func.func @transform_8(%arg0: i32) -> (i32, i32, i32) {
    %c0_i32 = arith.constant 0 : i32
    %c0_i32_0 = arith.constant 0 : i32
    %c0_i32_1 = arith.constant 0 : i32
    return %arg0, %c0_i32, %c0_i32_0 : i32, i32, i32
  }
  func.func @transform_9(%arg0: i32) -> (i32, i32) {
    %c0_i32 = arith.constant 0 : i32
    %c0_i32_0 = arith.constant 0 : i32
    %c0_i32_1 = arith.constant 0 : i32
    return %c0_i32, %c0_i32_0 : i32, i32
  }
  func.func @transform_10(%arg0: i32) -> (i32, i32) {
    %c0_i32 = arith.constant 0 : i32
    %c0_i32_0 = arith.constant 0 : i32
    %c0_i32_1 = arith.constant 0 : i32
    return %c0_i32, %c0_i32_0 : i32, i32
  }
  func.func @transform_11(%arg0: i32) -> (i32, i32) {
    %c0_i32 = arith.constant 0 : i32
    %c0_i32_0 = arith.constant 0 : i32
    return %arg0, %c0_i32 : i32, i32
  }
}

</mosaic_0001>

<llo_original>
// kernel: sc_positionwise_ff_low.1
$region0: #{sc_positionwise_ff_low.1}
  #allocation0 [shape = 'u32[]', space=smem, size = 0x4, offset = 0x4, fixed_abs, tag = 'smem constant byte address 0x4 - core index']
  #allocation1 [shape = 'u32[144,128]{1,0:T(1,128)}', space=vmem, size = 0x12000, scoped, tag = 'internal scratch']
  %s0 = inlined_call_operand.vmem [shape: f32[32,128], index: 0, kind: input, shape index: {}]
  %s1 = inlined_call_operand.vmem [shape: f32[128,128], index: 1, kind: input, shape index: {}]
  %s2 = inlined_call_operand.vmem [shape: f32[1,128], index: 2, kind: input, shape index: {}]
  %s3 = inlined_call_operand.vmem [shape: f32[2,3,128], index: 3, kind: input, shape index: {}]
  %s4 = inlined_call_operand.vmem [shape: f32[2,1,128], index: 4, kind: input, shape index: {}]
  %s5 = inlined_call_operand.vmem [shape: f32[2,1,128], index: 5, kind: input, shape index: {}]
  %s6 = inlined_call_operand.vmem [shape: f32[2,128,128], index: 6, kind: input, shape index: {}]
  %s7 = inlined_call_operand.vmem [shape: f32[2,1,128], index: 7, kind: input, shape index: {}]
  %s8 = inlined_call_operand.vmem [shape: f32[2,1,128], index: 8, kind: input, shape index: {}]
  %s9 = inlined_call_operand.vmem [shape: f32[128,128], index: 9, kind: input, shape index: {}]
  %s10 = inlined_call_operand.vmem [shape: f32[1,128], index: 10, kind: input, shape index: {}]
  %s11 = inlined_call_operand.vmem [shape: f32[32,128], index: 11, kind: output, shape index: {}]
  %s12 = sld [smem:[#allocation0]]
  $region54: #{sc_positionwise_ff_low.1} parent=0
    _
  %s14 = ssub.s32 1, %s12
  %s15 = scalar_select 0, %s14, %s12
  // Predicated region
  $region2: #{sc_positionwise_ff_low.1} parent=0 // pred_check
    _
  $region3: #{sc_positionwise_ff_low.1} parent=0 // pred_check_branch
    %17 = sbr.rel (0) target = $region5
  $region4: #{sc_positionwise_ff_low.1} parent=0 // pred_region
    _
  $region5: #{sc_positionwise_ff_low.1} parent=0 // pred_fallthru
    _
  // Predicated region
  $region6: #{sc_positionwise_ff_low.1} parent=0 // pred_check
    _
  $region7: #{sc_positionwise_ff_low.1} parent=0 // pred_check_branch
    %19 = sbr.rel (0) target = $region9
  $region8: #{sc_positionwise_ff_low.1} parent=0 // pred_region
    _
  $region9: #{sc_positionwise_ff_low.1} parent=0 // pred_fallthru
    _
  // Predicated region
  $region10: #{sc_positionwise_ff_low.1} parent=0 // pred_check
    _
  $region11: #{sc_positionwise_ff_low.1} parent=0 // pred_check_branch
    %21 = sbr.rel (0) target = $region13
  $region12: #{sc_positionwise_ff_low.1} parent=0 // pred_region
    _
  $region13: #{sc_positionwise_ff_low.1} parent=0 // pred_fallthru
    _
  // Predicated region
  $region14: #{sc_positionwise_ff_low.1} parent=0 // pred_check
    _
  $region15: #{sc_positionwise_ff_low.1} parent=0 // pred_check_branch
    %23 = sbr.rel (0) target = $region17
  $region16: #{sc_positionwise_ff_low.1} parent=0 // pred_region
    _
  $region17: #{sc_positionwise_ff_low.1} parent=0 // pred_fallthru
    _
  // Predicated region
  $region18: #{sc_positionwise_ff_low.1} parent=0 // pred_check
    _
  $region19: #{sc_positionwise_ff_low.1} parent=0 // pred_check_branch
    %25 = sbr.rel (0) target = $region21
  $region20: #{sc_positionwise_ff_low.1} parent=0 // pred_region
    _
  $region21: #{sc_positionwise_ff_low.1} parent=0 // pred_fallthru
    _
  // Predicated region
  $region22: #{sc_positionwise_ff_low.1} parent=0 // pred_check
    _
  $region23: #{sc_positionwise_ff_low.1} parent=0 // pred_check_branch
    %27 = sbr.rel (0) target = $region25
  $region24: #{sc_positionwise_ff_low.1} parent=0 // pred_region
    _
  $region25: #{sc_positionwise_ff_low.1} parent=0 // pred_fallthru
    _
  // Predicated region
  $region26: #{sc_positionwise_ff_low.1} parent=0 // pred_check
    _
  $region27: #{sc_positionwise_ff_low.1} parent=0 // pred_check_branch
    %29 = sbr.rel (0) target = $region29
  $region28: #{sc_positionwise_ff_low.1} parent=0 // pred_region
    _
  $region29: #{sc_positionwise_ff_low.1} parent=0 // pred_fallthru
    _
  // Predicated region
  $region30: #{sc_positionwise_ff_low.1} parent=0 // pred_check
    _
  $region31: #{sc_positionwise_ff_low.1} parent=0 // pred_check_branch
    %31 = sbr.rel (0) target = $region33
  $region32: #{sc_positionwise_ff_low.1} parent=0 // pred_region
    _
  $region33: #{sc_positionwise_ff_low.1} parent=0 // pred_fallthru
    _
  // Predicated region
  $region34: #{sc_positionwise_ff_low.1} parent=0 // pred_check
    _
  $region35: #{sc_positionwise_ff_low.1} parent=0 // pred_check_branch
    %33 = sbr.rel (0) target = $region37
  $region36: #{sc_positionwise_ff_low.1} parent=0 // pred_region
    _
  $region37: #{sc_positionwise_ff_low.1} parent=0 // pred_fallthru
    _
  // Predicated region
  $region38: #{sc_positionwise_ff_low.1} parent=0 // pred_check
    _
  $region39: #{sc_positionwise_ff_low.1} parent=0 // pred_check_branch
    %35 = sbr.rel (0) target = $region41
  $region40: #{sc_positionwise_ff_low.1} parent=0 // pred_region
    _
  $region41: #{sc_positionwise_ff_low.1} parent=0 // pred_fallthru
    _
  // Predicated region
  $region42: #{sc_positionwise_ff_low.1} parent=0 // pred_check
    _
  $region43: #{sc_positionwise_ff_low.1} parent=0 // pred_check_branch
    %37 = sbr.rel (0) target = $region45
  $region44: #{sc_positionwise_ff_low.1} parent=0 // pred_region
    _
  $region45: #{sc_positionwise_ff_low.1} parent=0 // pred_fallthru
    _
  %v38 = vld [vmem:[%s0] sm:$0xff]
  %v39 = vld [vmem:[%s0 + $0x8] sm:$0xff]
  %v40 = vld [vmem:[%s0 + $0x10] sm:$0xff]
  %v41 = vld [vmem:[%s0 + $0x18] sm:$0xff]
  %v42 = vld [vmem:[%s1] sm:$0xff]
  %v43 = vld [vmem:[%s1 + $0x8] sm:$0xff]
  %v44 = vld [vmem:[%s1 + $0x10] sm:$0xff]
  %v45 = vld [vmem:[%s1 + $0x18] sm:$0xff]
  %v46 = vld [vmem:[%s1 + $0x20] sm:$0xff]
  %v47 = vld [vmem:[%s1 + $0x28] sm:$0xff]
  %v48 = vld [vmem:[%s1 + $0x30] sm:$0xff]
  %v49 = vld [vmem:[%s1 + $0x38] sm:$0xff]
  %v50 = vld [vmem:[%s1 + $0x40] sm:$0xff]
  %v51 = vld [vmem:[%s1 + $0x48] sm:$0xff]
  %v52 = vld [vmem:[%s1 + $0x50] sm:$0xff]
  %v53 = vld [vmem:[%s1 + $0x58] sm:$0xff]
  %v54 = vld [vmem:[%s1 + $0x60] sm:$0xff]
  %v55 = vld [vmem:[%s1 + $0x68] sm:$0xff]
  %v56 = vld [vmem:[%s1 + $0x70] sm:$0xff]
  %v57 = vld [vmem:[%s1 + $0x78] sm:$0xff]
  %v58 = vld [vmem:[%s2] sm:$0x1]
  %v60 = vlaneseq
  %v61 = vshrl.u32 %v60, 7
  %v62 = vsub.s32 0, %v61
  %v63 = vrot.slane %v58, %v62
  %65 = vmatprep.subr.mxu0 0.0
  %66 = vmatpush1.msra.mxu0 %v42
  %67 = vmatprep.subr.mxu0 0.0
  %68 = vmatpush1.msra.mxu0 %v43
  %69 = vmatprep.subr.mxu0 0.0
  %70 = vmatpush1.msra.mxu0 %v44
  %71 = vmatprep.subr.mxu0 0.0
  %72 = vmatpush1.msra.mxu0 %v45
  %73 = vmatprep.subr.mxu0 0.0
  %74 = vmatpush1.msra.mxu0 %v46
  %75 = vmatprep.subr.mxu0 0.0
  %76 = vmatpush1.msra.mxu0 %v47
  %77 = vmatprep.subr.mxu0 0.0
  %78 = vmatpush1.msra.mxu0 %v48
  %79 = vmatprep.subr.mxu0 0.0
  %80 = vmatpush1.msra.mxu0 %v49
  %81 = vmatprep.subr.mxu0 0.0
  %82 = vmatpush1.msra.mxu0 %v50
  %83 = vmatprep.subr.mxu0 0.0
  %84 = vmatpush1.msra.mxu0 %v51
  %85 = vmatprep.subr.mxu0 0.0
  %86 = vmatpush1.msra.mxu0 %v52
  %87 = vmatprep.subr.mxu0 0.0
  %88 = vmatpush1.msra.mxu0 %v53
  %89 = vmatprep.subr.mxu0 0.0
  %90 = vmatpush1.msra.mxu0 %v54
  %91 = vmatprep.subr.mxu0 0.0
  %92 = vmatpush1.msra.mxu0 %v55
  %93 = vmatprep.subr.mxu0 0.0
  %94 = vmatpush1.msra.mxu0 %v56
  %95 = vmatprep.subr.mxu0 0.0
  %96 = vmatpush1.msra.mxu0 %v57
  %97 = vmatprep.subr.mxu0 0.0
  %98 = vmatpush1.msra.mxu0 0.0
  %99 = vmatprep.subr.mxu0 0.0
  %100 = vmatpush1.msra.mxu0 0.0
  %101 = vmatprep.subr.mxu0 0.0
  %102 = vmatpush1.msra.mxu0 0.0
  %103 = vmatprep.subr.mxu0 0.0
  %104 = vmatpush1.msra.mxu0 0.0
  %105 = vmatprep.subr.mxu0 0.0
  %106 = vmatpush1.msra.mxu0 0.0
  %107 = vmatprep.subr.mxu0 0.0
  %108 = vmatpush1.msra.mxu0 0.0
  %109 = vmatprep.subr.mxu0 0.0
  %110 = vmatpush1.msra.mxu0 0.0
  %111 = vmatprep.subr.mxu0 0.0
  %112 = vmatpush1.msra.mxu0 0.0
  %113 = vmatprep.subr.mxu0 0.0
  %114 = vmatpush1.msra.mxu0 0.0
  %115 = vmatprep.subr.mxu0 0.0
  %116 = vmatpush1.msra.mxu0 0.0
  %117 = vmatprep.subr.mxu0 0.0
  %118 = vmatpush1.msra.mxu0 0.0
  %119 = vmatprep.subr.mxu0 0.0
  %120 = vmatpush1.msra.mxu0 0.0
  %121 = vmatprep.subr.mxu0 0.0
  %122 = vmatpush1.msra.mxu0 0.0
  %123 = vmatprep.subr.mxu0 0.0
  %124 = vmatpush1.msra.mxu0 0.0
  %125 = vmatprep.subr.mxu0 0.0
  %126 = vmatpush1.msra.mxu0 0.0
  %127 = vmatprep.subr.mxu0 0.0
  %128 = vmatpush1.msra.mxu0 0.0
  %129 = vmatprep.mubr.f32.mxu0 0.0
  %130 = vmatmul.mubr.f32.gmra.mrb[0].mxu0 %v38
  %v131 = vpop.f32.mrb[0].mxu0
  %v132 = vadd.f32 %v63, %v131
  %v133 = vpop.f32.mrb[0].mxu0
  %134 = vmatprep.mubr.f32.mxu0 0.0
  %135 = vmatmul.mubr.f32.gmra.mrb[0].mxu0 %v39
  %v136 = vpop.f32.mrb[0].mxu0
  %v137 = vadd.f32 %v63, %v136
  %v138 = vpop.f32.mrb[0].mxu0
  %139 = vmatprep.mubr.f32.mxu0 0.0
  %140 = vmatmul.mubr.f32.gmra.mrb[0].mxu0 %v40
  %v141 = vpop.f32.mrb[0].mxu0
  %v142 = vadd.f32 %v63, %v141
  %v143 = vpop.f32.mrb[0].mxu0
  %144 = vmatprep.mubr.f32.mxu0 0.0
  %145 = vmatmul.mubr.f32.gmra.mrb[0].mxu0 %v41
  %v146 = vpop.f32.mrb[0].mxu0
  %v147 = vadd.f32 %v63, %v146
  %v148 = vpop.f32.mrb[0].mxu0
  %149 = vdwg.mxu0
  %v150 = vmin.f32 %v132, 20.0
  %v151 = vmin.f32 %v137, 20.0
  %v152 = vmin.f32 %v142, 20.0
  %v153 = vmin.f32 %v147, 20.0
  %v154 = vmul.f32 %v150, 1.442695
  %v155 = vpow.pop %v154
  %v156 = vmul.f32 %v151, 1.442695
  %v157 = vpow.pop %v156
  %v158 = vmul.f32 %v152, 1.442695
  %v159 = vpow.pop %v158
  %v160 = vmul.f32 %v153, 1.442695
  %v161 = vpow.pop %v160
  %v162 = vadd.f32 %v155, 2.0
  %v163 = vadd.f32 %v157, 2.0
  %v164 = vadd.f32 %v159, 2.0
  %v165 = vadd.f32 %v161, 2.0
  %v166 = vmul.f32 %v155, %v162
  %v167 = vmul.f32 %v157, %v163
  %v168 = vmul.f32 %v159, %v164
  %v169 = vmul.f32 %v161, %v165
  %vm170 = vcmp.gt.f32.partialorder %v132, 20.0
  %vm171 = vcmp.gt.f32.partialorder %v137, 20.0
  %vm172 = vcmp.gt.f32.partialorder %v142, 20.0
  %vm173 = vcmp.gt.f32.partialorder %v147, 20.0
  %v174 = vadd.f32 %v166, 2.0
  %v175 = vadd.f32 %v167, 2.0
  %v176 = vadd.f32 %v168, 2.0
  %v177 = vadd.f32 %v169, 2.0
  %v178 = vrcp.pop %v174
  %v179 = vmul.f32 %v166, %v178
  %v180 = vrcp.pop %v175
  %v181 = vmul.f32 %v167, %v180
  %v182 = vrcp.pop %v176
  %v183 = vmul.f32 %v168, %v182
  %v184 = vrcp.pop %v177
  %v185 = vmul.f32 %v169, %v184
  %v186 = vmul.f32 %v132, %v179
  %v187 = vmul.f32 %v137, %v181
  %v188 = vmul.f32 %v142, %v183
  %v189 = vmul.f32 %v147, %v185
  %v190 = vsel %vm170, %v132, %v186
  %v191 = vsel %vm171, %v137, %v187
  %v192 = vsel %vm172, %v142, %v188
  %v193 = vsel %vm173, %v147, %v189
  %v194 = vld [vmem:[%s3] sm:$0x7]
  %v195 = vld [vmem:[%s3 + $0x4] sm:$0x7]
  %v196 = vmul.f32 %v194, %v194
  %v197 = vmul.f32 %v195, %v195
  %vm198 = vcmask 1042432
  %v199 = vsel %vm198, %v196, 0.0
  %200 = vadd.xlane.f32.xlu0 %v199
  %v201 = vpop.xlane.xlu0 %200
  %v202 = vsel %vm198, %v197, 0.0
  %203 = vadd.xlane.f32.xlu0 %v202
  %v204 = vpop.xlane.xlu0 %203
  %v205 = vmax.f32 %v201, 1e-24
  %v206 = vmax.f32 %v204, 1e-24
  %v207 = vrsqrt.pop %v205
  %v208 = vrsqrt.pop %v206
  %v209 = vmul.f32 %v194, %v207
  %v210 = vmul.f32 %v195, %v208
  %v211 = vld [vmem:[%s4] sm:$0x1]
  %v212 = vld [vmem:[%s4 + $0x1] sm:$0x1]
  %v213 = vmul.f32 %v211, 16.0
  %v214 = vmul.f32 %v212, 16.0
  %v217 = vlaneseq
  %v218 = vshrl.u32 %v217, 7
  %v219 = vsub.s32 0, %v218
  %v220 = vrot.slane %v213, %v219
  %v221 = vlaneseq
  %v222 = vshrl.u32 %v221, 7
  %v223 = vsub.s32 0, %v222
  %v224 = vrot.slane %v214, %v223
  %v227 = vmul.f32 %v209, %v220
  %v228 = vmul.f32 %v210, %v224
  %v229 = vld [vmem:[%s6] sm:$0xff]
  %v230 = vld [vmem:[%s6 + $0x8] sm:$0xff]
  %v231 = vld [vmem:[%s6 + $0x10] sm:$0xff]
  %v232 = vld [vmem:[%s6 + $0x18] sm:$0xff]
  %v233 = vld [vmem:[%s6 + $0x20] sm:$0xff]
  %v234 = vld [vmem:[%s6 + $0x28] sm:$0xff]
  %v235 = vld [vmem:[%s6 + $0x30] sm:$0xff]
  %v236 = vld [vmem:[%s6 + $0x38] sm:$0xff]
  %v237 = vld [vmem:[%s6 + $0x40] sm:$0xff]
  %v238 = vld [vmem:[%s6 + $0x48] sm:$0xff]
  %v239 = vld [vmem:[%s6 + $0x50] sm:$0xff]
  %v240 = vld [vmem:[%s6 + $0x58] sm:$0xff]
  %v241 = vld [vmem:[%s6 + $0x60] sm:$0xff]
  %v242 = vld [vmem:[%s6 + $0x68] sm:$0xff]
  %v243 = vld [vmem:[%s6 + $0x70] sm:$0xff]
  %v244 = vld [vmem:[%s6 + $0x78] sm:$0xff]
  %v245 = vld [vmem:[%s6 + $0x80] sm:$0xff]
  %v246 = vld [vmem:[%s6 + $0x88] sm:$0xff]
  %v247 = vld [vmem:[%s6 + $0x90] sm:$0xff]
  %v248 = vld [vmem:[%s6 + $0x98] sm:$0xff]
  %v249 = vld [vmem:[%s6 + $0xa0] sm:$0xff]
  %v250 = vld [vmem:[%s6 + $0xa8] sm:$0xff]
  %v251 = vld [vmem:[%s6 + $0xb0] sm:$0xff]
  %v252 = vld [vmem:[%s6 + $0xb8] sm:$0xff]
  %v253 = vld [vmem:[%s6 + $0xc0] sm:$0xff]
  %v254 = vld [vmem:[%s6 + $0xc8] sm:$0xff]
  %v255 = vld [vmem:[%s6 + $0xd0] sm:$0xff]
  %v256 = vld [vmem:[%s6 + $0xd8] sm:$0xff]
  %v257 = vld [vmem:[%s6 + $0xe0] sm:$0xff]
  %v258 = vld [vmem:[%s6 + $0xe8] sm:$0xff]
  %v259 = vld [vmem:[%s6 + $0xf0] sm:$0xff]
  %v260 = vld [vmem:[%s6 + $0xf8] sm:$0xff]
  %v261 = vmul.f32 %v229, %v229
  %v262 = vmul.f32 %v230, %v230
  %v263 = vmul.f32 %v231, %v231
  %v264 = vmul.f32 %v232, %v232
  %v265 = vmul.f32 %v233, %v233
  %v266 = vmul.f32 %v234, %v234
  %v267 = vmul.f32 %v235, %v235
  %v268 = vmul.f32 %v236, %v236
  %v269 = vmul.f32 %v237, %v237
  %v270 = vmul.f32 %v238, %v238
  %v271 = vmul.f32 %v239, %v239
  %v272 = vmul.f32 %v240, %v240
  %v273 = vmul.f32 %v241, %v241
  %v274 = vmul.f32 %v242, %v242
  %v275 = vmul.f32 %v243, %v243
  %v276 = vmul.f32 %v244, %v244
  %v277 = vmul.f32 %v245, %v245
  %v278 = vmul.f32 %v246, %v246
  %v279 = vmul.f32 %v247, %v247
  %v280 = vmul.f32 %v248, %v248
  %v281 = vmul.f32 %v249, %v249
  %v282 = vmul.f32 %v250, %v250
  %v283 = vmul.f32 %v251, %v251
  %v284 = vmul.f32 %v252, %v252
  %v285 = vmul.f32 %v253, %v253
  %v286 = vmul.f32 %v254, %v254
  %v287 = vmul.f32 %v255, %v255
  %v288 = vmul.f32 %v256, %v256
  %v289 = vmul.f32 %v257, %v257
  %v290 = vmul.f32 %v258, %v258
  %v291 = vmul.f32 %v259, %v259
  %v292 = vmul.f32 %v260, %v260
  %v293 = vadd.f32 %v261, %v262
  %v294 = vadd.f32 %v293, %v263
  %v295 = vadd.f32 %v294, %v264
  %v296 = vadd.f32 %v295, %v265
  %v297 = vadd.f32 %v296, %v266
  %v298 = vadd.f32 %v297, %v267
  %v299 = vadd.f32 %v298, %v268
  %v300 = vadd.f32 %v299, %v269
  %v301 = vadd.f32 %v300, %v270
  %v302 = vadd.f32 %v301, %v271
  %v303 = vadd.f32 %v302, %v272
  %v304 = vadd.f32 %v303, %v273
  %v305 = vadd.f32 %v304, %v274
  %v306 = vadd.f32 %v305, %v275
  %v307 = vadd.f32 %v306, %v276
  %v308 = vrot.slane %v307, 4
  %v309 = vadd.f32 %v307, %v308
  %v310 = vrot.slane %v309, 2
  %v311 = vadd.f32 %v309, %v310
  %v312 = vrot.slane %v311, 1
  %v313 = vadd.f32 %v311, %v312
  %v314 = vadd.f32 %v277, %v278
  %v315 = vadd.f32 %v314, %v279
  %v316 = vadd.f32 %v315, %v280
  %v317 = vadd.f32 %v316, %v281
  %v318 = vadd.f32 %v317, %v282
  %v319 = vadd.f32 %v318, %v283
  %v320 = vadd.f32 %v319, %v284
  %v321 = vadd.f32 %v320, %v285
  %v322 = vadd.f32 %v321, %v286
  %v323 = vadd.f32 %v322, %v287
  %v324 = vadd.f32 %v323, %v288
  %v325 = vadd.f32 %v324, %v289
  %v326 = vadd.f32 %v325, %v290
  %v327 = vadd.f32 %v326, %v291
  %v328 = vadd.f32 %v327, %v292
  %v329 = vrot.slane %v328, 4
  %v330 = vadd.f32 %v328, %v329
  %v331 = vrot.slane %v330, 2
  %v332 = vadd.f32 %v330, %v331
  %v333 = vrot.slane %v332, 1
  %v334 = vadd.f32 %v332, %v333
  %v335 = vmax.f32 %v313, 1e-24
  %v336 = vmax.f32 %v334, 1e-24
  %v337 = vrsqrt.pop %v335
  %v338 = vrsqrt.pop %v336
  %v339 = vmul.f32 %v229, %v337
  %v340 = vmul.f32 %v230, %v337
  %v341 = vmul.f32 %v231, %v337
  %v342 = vmul.f32 %v232, %v337
  %v343 = vmul.f32 %v233, %v337
  %v344 = vmul.f32 %v234, %v337
  %v345 = vmul.f32 %v235, %v337
  %v346 = vmul.f32 %v236, %v337
  %v347 = vmul.f32 %v237, %v337
  %v348 = vmul.f32 %v238, %v337
  %v349 = vmul.f32 %v239, %v337
  %v350 = vmul.f32 %v240, %v337
  %v351 = vmul.f32 %v241, %v337
  %v352 = vmul.f32 %v242, %v337
  %v353 = vmul.f32 %v243, %v337
  %v354 = vmul.f32 %v244, %v337
  %v355 = vmul.f32 %v245, %v338
  %v356 = vmul.f32 %v246, %v338
  %v357 = vmul.f32 %v247, %v338
  %v358 = vmul.f32 %v248, %v338
  %v359 = vmul.f32 %v249, %v338
  %v360 = vmul.f32 %v250, %v338
  %v361 = vmul.f32 %v251, %v338
  %v362 = vmul.f32 %v252, %v338
  %v363 = vmul.f32 %v253, %v338
  %v364 = vmul.f32 %v254, %v338
  %v365 = vmul.f32 %v255, %v338
  %v366 = vmul.f32 %v256, %v338
  %v367 = vmul.f32 %v257, %v338
  %v368 = vmul.f32 %v258, %v338
  %v369 = vmul.f32 %v259, %v338
  %v370 = vmul.f32 %v260, %v338
  %v371 = vlaneseq
  %v372 = vshrl.u32 %v371, 7
  %v373 = vadd.s32 %v372, 8
  %v374 = vadd.s32 %v372, 4294967295
  %v375 = vadd.s32 %v373, 4294967295
  %vm376 = vcmp.ge.s32.totalorder %v374, 0
  %vm377 = vcmp.ge.s32.totalorder %v375, 0
  %vm378 = vcmp.lt.s32.totalorder %v374, 16
  %vm379 = vcmp.lt.s32.totalorder %v375, 16
  %vm380 = vmand %vm376, %vm378
  %vm381 = vmand %vm377, %vm379
  %v382 = vadd.s32 %v372, 1
  %v383 = vadd.s32 %v373, 1
  %vm384 = vcmp.ge.s32.totalorder %v382, 0
  %vm385 = vcmp.ge.s32.totalorder %v383, 0
  %vm386 = vcmp.lt.s32.totalorder %v382, 16
  %vm387 = vcmp.lt.s32.totalorder %v383, 16
  %vm388 = vmand %vm384, %vm386
  %vm389 = vmand %vm385, %vm387
  %v390 = vld [vmem:[%s9] sm:$0xff]
  %v391 = vld [vmem:[%s9 + $0x8] sm:$0xff]
  %v392 = vld [vmem:[%s9 + $0x10] sm:$0xff]
  %v393 = vld [vmem:[%s9 + $0x18] sm:$0xff]
  %v394 = vld [vmem:[%s9 + $0x20] sm:$0xff]
  %v395 = vld [vmem:[%s9 + $0x28] sm:$0xff]
  %v396 = vld [vmem:[%s9 + $0x30] sm:$0xff]
  %v397 = vld [vmem:[%s9 + $0x38] sm:$0xff]
  %v398 = vld [vmem:[%s9 + $0x40] sm:$0xff]
  %v399 = vld [vmem:[%s9 + $0x48] sm:$0xff]
  %v400 = vld [vmem:[%s9 + $0x50] sm:$0xff]
  %v401 = vld [vmem:[%s9 + $0x58] sm:$0xff]
  %v402 = vld [vmem:[%s9 + $0x60] sm:$0xff]
  %v403 = vld [vmem:[%s9 + $0x68] sm:$0xff]
  %v404 = vld [vmem:[%s9 + $0x70] sm:$0xff]
  %v405 = vld [vmem:[%s9 + $0x78] sm:$0xff]
  %v406 = vld [vmem:[%s10] sm:$0x1]
  %v407 = vrot.slane %v190, 7
  %v408 = vrot.slane %v191, 7
  %vm409 = vcmp.lt.s32.totalorder %v372, 1
  %v410 = vsel %vm409, %v407, %v408
  %v411 = vsel %vm409, %v408, %v407
  %v412 = vsel %vm380, 1, 0
  %v413 = vsel %vm381, 1, 0
  %vm414 = vcmp.eq.s32.totalorder %v412, 1
  %vm415 = vcmp.eq.s32.totalorder %v413, 1
  %v416 = vsel %vm414, %v411, 0.0
  %v417 = vsel %vm415, %v410, 0.0
  %v418 = vlaneseq
  %v419 = vshrl.u32 %v418, 7
  %v420 = vsub.s32 0, %v419
  %v421 = vrot.slane %v227, %v420
  %v422 = vmul.f32 %v416, %v421
  %v423 = vmul.f32 %v417, %v421
  %v424 = vlaneseq
  %v425 = vshrl.u32 %v424, 7
  %v426 = vsub.s32 1, %v425
  %v427 = vrot.slane %v227, %v426
  %v428 = vmul.f32 %v190, %v427
  %v429 = vmul.f32 %v191, %v427
  %v430 = vadd.f32 %v422, %v428
  %v431 = vadd.f32 %v423, %v429
  %v432 = vrot.slane %v190, 1
  %v433 = vrot.slane %v191, 1
  %vm434 = vcmp.lt.s32.totalorder %v372, 7
  %v435 = vsel %vm434, %v432, %v433
  %v436 = vsel %vm434, %v433, %v432
  %v437 = vsel %vm388, 1, 0
  %v438 = vsel %vm389, 1, 0
  %vm439 = vcmp.eq.s32.totalorder %v437, 1
  %vm440 = vcmp.eq.s32.totalorder %v438, 1
  %v441 = vsel %vm439, %v435, 0.0
  %v442 = vsel %vm440, %v436, 0.0
  %v443 = vlaneseq
  %v444 = vshrl.u32 %v443, 7
  %v445 = vsub.s32 2, %v444
  %v446 = vrot.slane %v227, %v445
  %v447 = vmul.f32 %v441, %v446
  %v448 = vmul.f32 %v442, %v446
  %v449 = vadd.f32 %v430, %v447
  %v450 = vadd.f32 %v431, %v448
  %v451 = vld [vmem:[%s5] sm:$0x1]
  %v453 = vlaneseq
  %v454 = vshrl.u32 %v453, 7
  %v455 = vsub.s32 0, %v454
  %v456 = vrot.slane %v451, %v455
  %v458 = vadd.f32 %v449, %v456
  %v459 = vadd.f32 %v450, %v456
  %v460 = vld [vmem:[%s7] sm:$0x1]
  %v462 = vlaneseq
  %v463 = vshrl.u32 %v462, 7
  %v464 = vsub.s32 0, %v463
  %v465 = vrot.slane %v460, %v464
  %v467 = vmul.f32 %v458, %v465
  %v468 = vmul.f32 %v459, %v465
  %v469 = vld [vmem:[%s8] sm:$0x1]
  %v471 = vlaneseq
  %v472 = vshrl.u32 %v471, 7
  %v473 = vsub.s32 0, %v472
  %v474 = vrot.slane %v469, %v473
  %476 = vmatprep.subr.mxu0 0.0
  %477 = vmatpush1.msra.mxu0 %v339
  %478 = vmatprep.subr.mxu0 0.0
  %479 = vmatpush1.msra.mxu0 %v340
  %480 = vmatprep.subr.mxu0 0.0
  %481 = vmatpush1.msra.mxu0 %v341
  %482 = vmatprep.subr.mxu0 0.0
  %483 = vmatpush1.msra.mxu0 %v342
  %484 = vmatprep.subr.mxu0 0.0
  %485 = vmatpush1.msra.mxu0 %v343
  %486 = vmatprep.subr.mxu0 0.0
  %487 = vmatpush1.msra.mxu0 %v344
  %488 = vmatprep.subr.mxu0 0.0
  %489 = vmatpush1.msra.mxu0 %v345
  %490 = vmatprep.subr.mxu0 0.0
  %491 = vmatpush1.msra.mxu0 %v346
  %492 = vmatprep.subr.mxu0 0.0
  %493 = vmatpush1.msra.mxu0 %v347
  %494 = vmatprep.subr.mxu0 0.0
  %495 = vmatpush1.msra.mxu0 %v348
  %496 = vmatprep.subr.mxu0 0.0
  %497 = vmatpush1.msra.mxu0 %v349
  %498 = vmatprep.subr.mxu0 0.0
  %499 = vmatpush1.msra.mxu0 %v350
  %500 = vmatprep.subr.mxu0 0.0
  %501 = vmatpush1.msra.mxu0 %v351
  %502 = vmatprep.subr.mxu0 0.0
  %503 = vmatpush1.msra.mxu0 %v352
  %504 = vmatprep.subr.mxu0 0.0
  %505 = vmatpush1.msra.mxu0 %v353
  %506 = vmatprep.subr.mxu0 0.0
  %507 = vmatpush1.msra.mxu0 %v354
  %508 = vmatprep.subr.mxu0 0.0
  %509 = vmatpush1.msra.mxu0 0.0
  %510 = vmatprep.subr.mxu0 0.0
  %511 = vmatpush1.msra.mxu0 0.0
  %512 = vmatprep.subr.mxu0 0.0
  %513 = vmatpush1.msra.mxu0 0.0
  %514 = vmatprep.subr.mxu0 0.0
  %515 = vmatpush1.msra.mxu0 0.0
  %516 = vmatprep.subr.mxu0 0.0
  %517 = vmatpush1.msra.mxu0 0.0
  %518 = vmatprep.subr.mxu0 0.0
  %519 = vmatpush1.msra.mxu0 0.0
  %520 = vmatprep.subr.mxu0 0.0
  %521 = vmatpush1.msra.mxu0 0.0
  %522 = vmatprep.subr.mxu0 0.0
  %523 = vmatpush1.msra.mxu0 0.0
  %524 = vmatprep.subr.mxu0 0.0
  %525 = vmatpush1.msra.mxu0 0.0
  %526 = vmatprep.subr.mxu0 0.0
  %527 = vmatpush1.msra.mxu0 0.0
  %528 = vmatprep.subr.mxu0 0.0
  %529 = vmatpush1.msra.mxu0 0.0
  %530 = vmatprep.subr.mxu0 0.0
  %531 = vmatpush1.msra.mxu0 0.0
  %532 = vmatprep.subr.mxu0 0.0
  %533 = vmatpush1.msra.mxu0 0.0
  %534 = vmatprep.subr.mxu0 0.0
  %535 = vmatpush1.msra.mxu0 0.0
  %536 = vmatprep.subr.mxu0 0.0
  %537 = vmatpush1.msra.mxu0 0.0
  %538 = vmatprep.subr.mxu0 0.0
  %539 = vmatpush1.msra.mxu0 0.0
  %540 = vmatprep.mubr.f32.mxu0 0.0
  %541 = vmatmul.mubr.f32.gmra.mrb[0].mxu0 %v467
  %v542 = vpop.f32.mrb[0].mxu0
  %v543 = vadd.f32 %v474, %v542
  %v544 = vpop.f32.mrb[0].mxu0
  %545 = vmatprep.mubr.f32.mxu0 0.0
  %546 = vmatmul.mubr.f32.gmra.mrb[0].mxu0 %v468
  %v547 = vpop.f32.mrb[0].mxu0
  %v548 = vadd.f32 %v474, %v547
  %v549 = vpop.f32.mrb[0].mxu0
  %550 = vdwg.mxu0
  %v552 = vlaneseq
  %v553 = vshrl.u32 %v552, 7
  %v554 = vsub.s32 0, %v553
  %v555 = vrot.slane %v406, %v554
  %557 = vmatprep.subr.mxu0 0.0
  %558 = vmatpush1.msra.mxu0 %v390
  %559 = vmatprep.subr.mxu0 0.0
  %560 = vmatpush1.msra.mxu0 %v391
  %561 = vmatprep.subr.mxu0 0.0
  %562 = vmatpush1.msra.mxu0 %v392
  %563 = vmatprep.subr.mxu0 0.0
  %564 = vmatpush1.msra.mxu0 %v393
  %565 = vmatprep.subr.mxu0 0.0
  %566 = vmatpush1.msra.mxu0 %v394
  %567 = vmatprep.subr.mxu0 0.0
  %568 = vmatpush1.msra.mxu0 %v395
  %569 = vmatprep.subr.mxu0 0.0
  %570 = vmatpush1.msra.mxu0 %v396
  %571 = vmatprep.subr.mxu0 0.0
  %572 = vmatpush1.msra.mxu0 %v397
  %573 = vmatprep.subr.mxu0 0.0
  %574 = vmatpush1.msra.mxu0 %v398
  %575 = vmatprep.subr.mxu0 0.0
  %576 = vmatpush1.msra.mxu0 %v399
  %577 = vmatprep.subr.mxu0 0.0
  %578 = vmatpush1.msra.mxu0 %v400
  %579 = vmatprep.subr.mxu0 0.0
  %580 = vmatpush1.msra.mxu0 %v401
  %581 = vmatprep.subr.mxu0 0.0
  %582 = vmatpush1.msra.mxu0 %v402
  %583 = vmatprep.subr.mxu0 0.0
  %584 = vmatpush1.msra.mxu0 %v403
  %585 = vmatprep.subr.mxu0 0.0
  %586 = vmatpush1.msra.mxu0 %v404
  %587 = vmatprep.subr.mxu0 0.0
  %588 = vmatpush1.msra.mxu0 %v405
  %589 = vmatprep.subr.mxu0 0.0
  %590 = vmatpush1.msra.mxu0 0.0
  %591 = vmatprep.subr.mxu0 0.0
  %592 = vmatpush1.msra.mxu0 0.0
  %593 = vmatprep.subr.mxu0 0.0
  %594 = vmatpush1.msra.mxu0 0.0
  %595 = vmatprep.subr.mxu0 0.0
  %596 = vmatpush1.msra.mxu0 0.0
  %597 = vmatprep.subr.mxu0 0.0
  %598 = vmatpush1.msra.mxu0 0.0
  %599 = vmatprep.subr.mxu0 0.0
  %600 = vmatpush1.msra.mxu0 0.0
  %601 = vmatprep.subr.mxu0 0.0
  %602 = vmatpush1.msra.mxu0 0.0
  %603 = vmatprep.subr.mxu0 0.0
  %604 = vmatpush1.msra.mxu0 0.0
  %605 = vmatprep.subr.mxu0 0.0
  %606 = vmatpush1.msra.mxu0 0.0
  %607 = vmatprep.subr.mxu0 0.0
  %608 = vmatpush1.msra.mxu0 0.0
  %609 = vmatprep.subr.mxu0 0.0
  %610 = vmatpush1.msra.mxu0 0.0
  %611 = vmatprep.subr.mxu0 0.0
  %612 = vmatpush1.msra.mxu0 0.0
  %613 = vmatprep.subr.mxu0 0.0
  %614 = vmatpush1.msra.mxu0 0.0
  %615 = vmatprep.subr.mxu0 0.0
  %616 = vmatpush1.msra.mxu0 0.0
  %617 = vmatprep.subr.mxu0 0.0
  %618 = vmatpush1.msra.mxu0 0.0
  %619 = vmatprep.subr.mxu0 0.0
  %620 = vmatpush1.msra.mxu0 0.0
  %621 = vmatprep.mubr.f32.mxu0 0.0
  %622 = vmatmul.mubr.f32.gmra.mrb[0].mxu0 %v543
  %v623 = vpop.f32.mrb[0].mxu0
  %v624 = vadd.f32 %v555, %v623
  %v625 = vpop.f32.mrb[0].mxu0
  %626 = vmatprep.mubr.f32.mxu0 0.0
  %627 = vmatmul.mubr.f32.gmra.mrb[0].mxu0 %v548
  %v628 = vpop.f32.mrb[0].mxu0
  %v629 = vadd.f32 %v555, %v628
  %v630 = vpop.f32.mrb[0].mxu0
  %631 = vdwg.mxu0
  %v632 = vadd.f32 %v624, %v38
  %v633 = vadd.f32 %v629, %v39
  %634 = vst [vmem:[%s11] sm:$0xff] %v632
  %635 = vst [vmem:[%s11 + $0x8] sm:$0xff] %v633
  %v636 = vrot.slane %v192, 7
  %v637 = vrot.slane %v193, 7
  %v638 = vsel %vm409, %v636, %v637
  %v639 = vsel %vm409, %v637, %v636
  %v640 = vsel %vm414, %v639, 0.0
  %v641 = vsel %vm415, %v638, 0.0
  %v642 = vlaneseq
  %v643 = vshrl.u32 %v642, 7
  %v644 = vsub.s32 0, %v643
  %v645 = vrot.slane %v228, %v644
  %v646 = vmul.f32 %v640, %v645
  %v647 = vmul.f32 %v641, %v645
  %v648 = vlaneseq
  %v649 = vshrl.u32 %v648, 7
  %v650 = vsub.s32 1, %v649
  %v651 = vrot.slane %v228, %v650
  %v652 = vmul.f32 %v192, %v651
  %v653 = vmul.f32 %v193, %v651
  %v654 = vadd.f32 %v646, %v652
  %v655 = vadd.f32 %v647, %v653
  %v656 = vrot.slane %v192, 1
  %v657 = vrot.slane %v193, 1
  %v658 = vsel %vm434, %v656, %v657
  %v659 = vsel %vm434, %v657, %v656
  %v660 = vsel %vm439, %v658, 0.0
  %v661 = vsel %vm440, %v659, 0.0
  %v662 = vlaneseq
  %v663 = vshrl.u32 %v662, 7
  %v664 = vsub.s32 2, %v663
  %v665 = vrot.slane %v228, %v664
  %v666 = vmul.f32 %v660, %v665
  %v667 = vmul.f32 %v661, %v665
  %v668 = vadd.f32 %v654, %v666
  %v669 = vadd.f32 %v655, %v667
  %s670 = scalar_lea.vmem %s5, 1
  %v671 = vld [vmem:[%s670] sm:$0x1]
  %v673 = vlaneseq
  %v674 = vshrl.u32 %v673, 7
  %v675 = vsub.s32 0, %v674
  %v676 = vrot.slane %v671, %v675
  %v678 = vadd.f32 %v668, %v676
  %v679 = vadd.f32 %v669, %v676
  %s680 = scalar_lea.vmem %s7, 1
  %v681 = vld [vmem:[%s680] sm:$0x1]
  %v683 = vlaneseq
  %v684 = vshrl.u32 %v683, 7
  %v685 = vsub.s32 0, %v684
  %v686 = vrot.slane %v681, %v685
  %v688 = vmul.f32 %v678, %v686
  %v689 = vmul.f32 %v679, %v686
  %s690 = scalar_lea.vmem %s8, 1
  %v691 = vld [vmem:[%s690] sm:$0x1]
  %v693 = vlaneseq
  %v694 = vshrl.u32 %v693, 7
  %v695 = vsub.s32 0, %v694
  %v696 = vrot.slane %v691, %v695
  %698 = vmatprep.subr.mxu0 0.0
  %699 = vmatpush1.msra.mxu0 %v355
  %700 = vmatprep.subr.mxu0 0.0
  %701 = vmatpush1.msra.mxu0 %v356
  %702 = vmatprep.subr.mxu0 0.0
  %703 = vmatpush1.msra.mxu0 %v357
  %704 = vmatprep.subr.mxu0 0.0
  %705 = vmatpush1.msra.mxu0 %v358
  %706 = vmatprep.subr.mxu0 0.0
  %707 = vmatpush1.msra.mxu0 %v359
  %708 = vmatprep.subr.mxu0 0.0
  %709 = vmatpush1.msra.mxu0 %v360
  %710 = vmatprep.subr.mxu0 0.0
  %711 = vmatpush1.msra.mxu0 %v361
  %712 = vmatprep.subr.mxu0 0.0
  %713 = vmatpush1.msra.mxu0 %v362
  %714 = vmatprep.subr.mxu0 0.0
  %715 = vmatpush1.msra.mxu0 %v363
  %716 = vmatprep.subr.mxu0 0.0
  %717 = vmatpush1.msra.mxu0 %v364
  %718 = vmatprep.subr.mxu0 0.0
  %719 = vmatpush1.msra.mxu0 %v365
  %720 = vmatprep.subr.mxu0 0.0
  %721 = vmatpush1.msra.mxu0 %v366
  %722 = vmatprep.subr.mxu0 0.0
  %723 = vmatpush1.msra.mxu0 %v367
  %724 = vmatprep.subr.mxu0 0.0
  %725 = vmatpush1.msra.mxu0 %v368
  %726 = vmatprep.subr.mxu0 0.0
  %727 = vmatpush1.msra.mxu0 %v369
  %728 = vmatprep.subr.mxu0 0.0
  %729 = vmatpush1.msra.mxu0 %v370
  %730 = vmatprep.subr.mxu0 0.0
  %731 = vmatpush1.msra.mxu0 0.0
  %732 = vmatprep.subr.mxu0 0.0
  %733 = vmatpush1.msra.mxu0 0.0
  %734 = vmatprep.subr.mxu0 0.0
  %735 = vmatpush1.msra.mxu0 0.0
  %736 = vmatprep.subr.mxu0 0.0
  %737 = vmatpush1.msra.mxu0 0.0
  %738 = vmatprep.subr.mxu0 0.0
  %739 = vmatpush1.msra.mxu0 0.0
  %740 = vmatprep.subr.mxu0 0.0
  %741 = vmatpush1.msra.mxu0 0.0
  %742 = vmatprep.subr.mxu0 0.0
  %743 = vmatpush1.msra.mxu0 0.0
  %744 = vmatprep.subr.mxu0 0.0
  %745 = vmatpush1.msra.mxu0 0.0
  %746 = vmatprep.subr.mxu0 0.0
  %747 = vmatpush1.msra.mxu0 0.0
  %748 = vmatprep.subr.mxu0 0.0
  %749 = vmatpush1.msra.mxu0 0.0
  %750 = vmatprep.subr.mxu0 0.0
  %751 = vmatpush1.msra.mxu0 0.0
  %752 = vmatprep.subr.mxu0 0.0
  %753 = vmatpush1.msra.mxu0 0.0
  %754 = vmatprep.subr.mxu0 0.0
  %755 = vmatpush1.msra.mxu0 0.0
  %756 = vmatprep.subr.mxu0 0.0
  %757 = vmatpush1.msra.mxu0 0.0
  %758 = vmatprep.subr.mxu0 0.0
  %759 = vmatpush1.msra.mxu0 0.0
  %760 = vmatprep.subr.mxu0 0.0
  %761 = vmatpush1.msra.mxu0 0.0
  %762 = vmatprep.mubr.f32.mxu0 0.0
  %763 = vmatmul.mubr.f32.gmra.mrb[0].mxu0 %v688
  %v764 = vpop.f32.mrb[0].mxu0
  %v765 = vadd.f32 %v696, %v764
  %v766 = vpop.f32.mrb[0].mxu0
  %767 = vmatprep.mubr.f32.mxu0 0.0
  %768 = vmatmul.mubr.f32.gmra.mrb[0].mxu0 %v689
  %v769 = vpop.f32.mrb[0].mxu0
  %v770 = vadd.f32 %v696, %v769
  %v771 = vpop.f32.mrb[0].mxu0
  %772 = vdwg.mxu0
  %773 = vmatprep.subr.mxu0 0.0
  %774 = vmatpush1.msra.mxu0 %v390
  %775 = vmatprep.subr.mxu0 0.0
  %776 = vmatpush1.msra.mxu0 %v391
  %777 = vmatprep.subr.mxu0 0.0
  %778 = vmatpush1.msra.mxu0 %v392
  %779 = vmatprep.subr.mxu0 0.0
  %780 = vmatpush1.msra.mxu0 %v393
  %781 = vmatprep.subr.mxu0 0.0
  %782 = vmatpush1.msra.mxu0 %v394
  %783 = vmatprep.subr.mxu0 0.0
  %784 = vmatpush1.msra.mxu0 %v395
  %785 = vmatprep.subr.mxu0 0.0
  %786 = vmatpush1.msra.mxu0 %v396
  %787 = vmatprep.subr.mxu0 0.0
  %788 = vmatpush1.msra.mxu0 %v397
  %789 = vmatprep.subr.mxu0 0.0
  %790 = vmatpush1.msra.mxu0 %v398
  %791 = vmatprep.subr.mxu0 0.0
  %792 = vmatpush1.msra.mxu0 %v399
  %793 = vmatprep.subr.mxu0 0.0
  %794 = vmatpush1.msra.mxu0 %v400
  %795 = vmatprep.subr.mxu0 0.0
  %796 = vmatpush1.msra.mxu0 %v401
  %797 = vmatprep.subr.mxu0 0.0
  %798 = vmatpush1.msra.mxu0 %v402
  %799 = vmatprep.subr.mxu0 0.0
  %800 = vmatpush1.msra.mxu0 %v403
  %801 = vmatprep.subr.mxu0 0.0
  %802 = vmatpush1.msra.mxu0 %v404
  %803 = vmatprep.subr.mxu0 0.0
  %804 = vmatpush1.msra.mxu0 %v405
  %805 = vmatprep.subr.mxu0 0.0
  %806 = vmatpush1.msra.mxu0 0.0
  %807 = vmatprep.subr.mxu0 0.0
  %808 = vmatpush1.msra.mxu0 0.0
  %809 = vmatprep.subr.mxu0 0.0
  %810 = vmatpush1.msra.mxu0 0.0
  %811 = vmatprep.subr.mxu0 0.0
  %812 = vmatpush1.msra.mxu0 0.0
  %813 = vmatprep.subr.mxu0 0.0
  %814 = vmatpush1.msra.mxu0 0.0
  %815 = vmatprep.subr.mxu0 0.0
  %816 = vmatpush1.msra.mxu0 0.0
  %817 = vmatprep.subr.mxu0 0.0
  %818 = vmatpush1.msra.mxu0 0.0
  %819 = vmatprep.subr.mxu0 0.0
  %820 = vmatpush1.msra.mxu0 0.0
  %821 = vmatprep.subr.mxu0 0.0
  %822 = vmatpush1.msra.mxu0 0.0
  %823 = vmatprep.subr.mxu0 0.0
  %824 = vmatpush1.msra.mxu0 0.0
  %825 = vmatprep.subr.mxu0 0.0
  %826 = vmatpush1.msra.mxu0 0.0
  %827 = vmatprep.subr.mxu0 0.0
  %828 = vmatpush1.msra.mxu0 0.0
  %829 = vmatprep.subr.mxu0 0.0
  %830 = vmatpush1.msra.mxu0 0.0
  %831 = vmatprep.subr.mxu0 0.0
  %832 = vmatpush1.msra.mxu0 0.0
  %833 = vmatprep.subr.mxu0 0.0
  %834 = vmatpush1.msra.mxu0 0.0
  %835 = vmatprep.subr.mxu0 0.0
  %836 = vmatpush1.msra.mxu0 0.0
  %837 = vmatprep.mubr.f32.mxu0 0.0
  %838 = vmatmul.mubr.f32.gmra.mrb[0].mxu0 %v765
  %v839 = vpop.f32.mrb[0].mxu0
  %v840 = vadd.f32 %v555, %v839
  %v841 = vpop.f32.mrb[0].mxu0
  %842 = vmatprep.mubr.f32.mxu0 0.0
  %843 = vmatmul.mubr.f32.gmra.mrb[0].mxu0 %v770
  %v844 = vpop.f32.mrb[0].mxu0
  %v845 = vadd.f32 %v555, %v844
  %v846 = vpop.f32.mrb[0].mxu0
  %847 = vdwg.mxu0
  %v848 = vadd.f32 %v840, %v40
  %v849 = vadd.f32 %v845, %v41
  %850 = vst [vmem:[%s11 + $0x10] sm:$0xff] %v848
  %851 = vst [vmem:[%s11 + $0x18] sm:$0xff] %v849
  // Predicated region
  $region46: #{sc_positionwise_ff_low.1} parent=0 // pred_check
    _
  $region47: #{sc_positionwise_ff_low.1} parent=0 // pred_check_branch
    %853 = sbr.rel (0) target = $region49
  $region48: #{sc_positionwise_ff_low.1} parent=0 // pred_region
    _
  $region49: #{sc_positionwise_ff_low.1} parent=0 // pred_fallthru
    _
  // Predicated region
  $region50: #{sc_positionwise_ff_low.1} parent=0 // pred_check
    _
  $region51: #{sc_positionwise_ff_low.1} parent=0 // pred_check_branch
    %855 = sbr.rel (0) target = $region53
  $region52: #{sc_positionwise_ff_low.1} parent=0 // pred_region
    _
  $region53: #{sc_positionwise_ff_low.1} parent=0 // pred_fallthru
    _

</llo_original>
